<compile_context>
chip_gen: v5e
topology: v5e:2x2
jax: 0.10.0
libtpu: 0.0.40
codegen_flags: <defaults>
</compile_context>

<pallas_src>
import functools
import math

import jax
import jax.numpy as jnp
from jax.experimental import pallas as pl
from jax.experimental.pallas import tpu as pltpu


def _round_up(x, m):
    return ((x + m - 1) // m) * m


def mlp_kernel(x_ref,
               w1, b1, w2, b2, w3, b3, w4, b4, w5, b5, w6, b6,
               o_ref, *, row_sub, n_sub):
    """Fused 6-layer MLP forward for one batch tile (weights resident in VMEM).

    Batch-on-lanes layout: activations are (features, rows); weights arrive
    pre-transposed as (fan_out, fan_in), biases as (fan_out, 1) columns.
    """
    # Hoisted ref reads -- shared by every (statically unrolled) sub-tile.
    w1v = w1[...]; b1v = b1[...]          # (H, 1) each; layer-1 has K == 1
    w2v = w2[...]; b2v = b2[...]
    w3v = w3[...]; b3v = b3[...]
    w4v = w4[...]; b4v = b4[...]
    w5v = w5[...]; b5v = b5[...]
    w6v = w6[...]; b6v = b6[...]

    for s in range(n_sub):                # static loop -> static (free) slices
        r0 = s * row_sub
        x_row = x_ref[:, r0:r0 + row_sub].astype(jnp.float32)         # (1, rows)
        # Layer 1 (K=1): VPU broadcast outer-product, skip the MXU round-trip.
        h = jnp.maximum(w1v * x_row + b1v, 0.0)                        # (H, rows)
        h = jnp.maximum(
            jnp.dot(w2v, h, preferred_element_type=jnp.float32) + b2v, 0.0)
        h = jnp.maximum(
            jnp.dot(w3v, h, preferred_element_type=jnp.float32) + b3v, 0.0)
        h = jnp.maximum(
            jnp.dot(w4v, h, preferred_element_type=jnp.float32) + b4v, 0.0)
        h = jnp.maximum(
            jnp.dot(w5v, h, preferred_element_type=jnp.float32) + b5v, 0.0)
        y = jnp.dot(w6v, h, preferred_element_type=jnp.float32) + b6v  # (out_f, rows)
        o_ref[:, r0:r0 + row_sub] = y.astype(o_ref.dtype)


def init_mlp_params(key, input_size, output_size, hidden_size):
    """Deterministic init mimicking nn.Linear default (uniform(-1/sqrt(fan_in), ...))."""
    dims = [(input_size, hidden_size),
            (hidden_size, hidden_size),
            (hidden_size, hidden_size * 5),
            (hidden_size * 5, hidden_size),
            (hidden_size, hidden_size),
            (hidden_size, output_size)]
    params = []
    for (fan_in, fan_out) in dims:
        key, kw, kb = jax.random.split(key, 3)
        bound = 1.0 / math.sqrt(fan_in)
        w = jax.random.uniform(kw, (fan_in, fan_out), jnp.float32, -bound, bound)
        b = jax.random.uniform(kb, (1, fan_out), jnp.float32, -bound, bound)
        params.extend([w, b])
    return params


@functools.partial(jax.jit, static_argnames=("batch_tile",))
def mlp_forward(x, params, batch_tile=4096):
    """x: any shape with leading batch dim; flattened feature size must be 1."""
    B = x.shape[0]
    x2d = x.reshape(B, -1)                 # nn.Flatten(); cast to f32 in-kernel
    in_f = x2d.shape[1]
    if in_f != 1:
        # The module hard-codes nn.Linear(1, hidden) after nn.Flatten().
        raise ValueError(f"flattened feature size must be 1, got {in_f}")
    out_f = params[-1].shape[-1]

    # Pre-transpose params to the batch-on-lanes layout: W -> (fan_out, fan_in),
    # b -> (fan_out, 1).  Tiny one-off XLA copies (~66 KiB total at H=32).
    kparams = []
    for w, b in zip(params[0::2], params[1::2]):
        kparams.append(w.T)
        kparams.append(b.reshape(-1, 1))

    # Batch tiling: tiles are multiples of 128 (lane width); big tiles amortize
    # the ~0.35us/grid-step overhead.  On v7x keep >= 2 "parallel" grid steps
    # so both TensorCores get work whenever the batch allows it.
    batch_tile = max(128, _round_up(int(batch_tile), 128))
    B128 = _round_up(B, 128)
    bt = min(batch_tile, B128)
    if B128 >= 256 and bt >= B128:         # grid would otherwise collapse to 1
        bt = _round_up(B128 // 2, 128)
    B_pad = _round_up(B, bt)
    grid = (B_pad // bt,)

    # In-kernel batch sub-tiling bounds the live (5H, rows) intermediate
    # (row_sub=256 -> ~40 vreg tiles at H=32).
    row_sub = 256 if bt % 256 == 0 else 128
    n_sub = bt // row_sub

    # Transposed input: (1, B_pad), batch on lanes (for in_f == 1 this is a
    # free reshape).  Ragged batches are zero-padded, never asserted on.
    x_row = x2d.reshape(1, B)
    if B_pad != B:
        x_row = jnp.pad(x_row, ((0, 0), (0, B_pad - B)))

    x_spec = pl.BlockSpec((1, bt), lambda i: (0, i))
    o_spec = pl.BlockSpec((out_f, bt), lambda i: (0, i))
    # Constant index_map -> weights/biases stay resident in VMEM across steps.
    param_specs = [pl.BlockSpec(p.shape, lambda i: (0, 0)) for p in kparams]

    kernel = functools.partial(mlp_kernel, row_sub=row_sub, n_sub=n_sub)
    out = pl.pallas_call(
        kernel,
        out_shape=jax.ShapeDtypeStruct((out_f, B_pad), jnp.float32),
        grid_spec=pltpu.PrefetchScalarGridSpec(
            num_scalar_prefetch=0,
            grid=grid,
            in_specs=[x_spec] + param_specs,
            out_specs=o_spec,
        ),
        compiler_params=pltpu.CompilerParams(
            dimension_semantics=("parallel",),
        ),
    )(x_row, *kparams)
    # (out_f, B_pad) -> (B, out_f); in-kernel stores were unpadded & lane-dense.
    return out[:, :B].T


def mlp_reference(x, params):
    """Pure-JAX reference of the PyTorch forward."""
    h = x.reshape(x.shape[0], -1).astype(jnp.float32)
    w1, b1, w2, b2, w3, b3, w4, b4, w5, b5, w6, b6 = params
    h = jnp.maximum(h @ w1 + b1, 0.0)
    h = jnp.maximum(h @ w2 + b2, 0.0)
    h = jnp.maximum(h @ w3 + b3, 0.0)
    h = jnp.maximum(h @ w4 + b4, 0.0)
    h = jnp.maximum(h @ w5 + b5, 0.0)
    return h @ w6 + b6


if __name__ == "__main__":
    # Module hard-codes Linear(1, hidden) after Flatten, so flattened feature size is 1.
    input_size = 1
    hidden_size = 32
    output_size = 8

    key = jax.random.PRNGKey(0)
    k_x, k_p = jax.random.split(key)
    params = init_mlp_params(k_p, input_size, output_size, hidden_size)

    ok = True
    # (batch, batch_tile): exercises (a) small single-tile, (b) ragged batch
    # padding, (c) the >=2-grid-step (v7x megacore) split, (d) the in-kernel
    # row_sub sub-tile loop across multiple grid steps.
    for batch, bt in [(8, 4096), (13, 4096), (512, 4096), (1200, 512)]:
        x = jax.random.normal(jax.random.fold_in(k_x, batch), (batch, 1, 1), jnp.float32)
        out = jax.block_until_ready(mlp_forward(x, params, batch_tile=bt))
        ref = mlp_reference(x, params)
        ok &= out.shape == (batch, output_size)
        ok &= bool(jnp.allclose(out, ref, atol=1e-4, rtol=1e-4))
        assert ok, f"mismatch vs reference at batch={batch}"

    print("KERNEL_OK")
</pallas_src>

<mosaic_0001>
module attributes {stable_mosaic.version = 11 : i64} {
  func.func @mlp_kernel(%arg0: i32, %arg1: memref<1x128xf32, #tpu.memory_space<vmem>>, %arg2: memref<32x1xf32, #tpu.memory_space<vmem>>, %arg3: memref<32x1xf32, #tpu.memory_space<vmem>>, %arg4: memref<32x32xf32, #tpu.memory_space<vmem>>, %arg5: memref<32x1xf32, #tpu.memory_space<vmem>>, %arg6: memref<160x32xf32, #tpu.memory_space<vmem>>, %arg7: memref<160x1xf32, #tpu.memory_space<vmem>>, %arg8: memref<32x160xf32, #tpu.memory_space<vmem>>, %arg9: memref<32x1xf32, #tpu.memory_space<vmem>>, %arg10: memref<32x32xf32, #tpu.memory_space<vmem>>, %arg11: memref<32x1xf32, #tpu.memory_space<vmem>>, %arg12: memref<8x32xf32, #tpu.memory_space<vmem>>, %arg13: memref<8x1xf32, #tpu.memory_space<vmem>>, %arg14: memref<8x128xf32, #tpu.memory_space<vmem>>) attributes {dimension_semantics = [#tpu.dimension_semantics<parallel>], iteration_bounds = array<i64: 1>, scalar_prefetch = 0 : i64, scratch_operands = 0 : i64, tpu.core_type = #tpu.core_type<tc>, window_params = [{transform_indices = @transform_0, window_bounds = array<i64: 1, 128>}, {pipeline_mode = #tpu.pipeline_mode<synchronous>, transform_indices = @transform_1, window_bounds = array<i64: 32, 1>}, {pipeline_mode = #tpu.pipeline_mode<synchronous>, transform_indices = @transform_2, window_bounds = array<i64: 32, 1>}, {pipeline_mode = #tpu.pipeline_mode<synchronous>, transform_indices = @transform_3, window_bounds = array<i64: 32, 32>}, {pipeline_mode = #tpu.pipeline_mode<synchronous>, transform_indices = @transform_4, window_bounds = array<i64: 32, 1>}, {pipeline_mode = #tpu.pipeline_mode<synchronous>, transform_indices = @transform_5, window_bounds = array<i64: 160, 32>}, {pipeline_mode = #tpu.pipeline_mode<synchronous>, transform_indices = @transform_6, window_bounds = array<i64: 160, 1>}, {pipeline_mode = #tpu.pipeline_mode<synchronous>, transform_indices = @transform_7, window_bounds = array<i64: 32, 160>}, {pipeline_mode = #tpu.pipeline_mode<synchronous>, transform_indices = @transform_8, window_bounds = array<i64: 32, 1>}, {pipeline_mode = #tpu.pipeline_mode<synchronous>, transform_indices = @transform_9, window_bounds = array<i64: 32, 32>}, {pipeline_mode = #tpu.pipeline_mode<synchronous>, transform_indices = @transform_10, window_bounds = array<i64: 32, 1>}, {pipeline_mode = #tpu.pipeline_mode<synchronous>, transform_indices = @transform_11, window_bounds = array<i64: 8, 32>}, {pipeline_mode = #tpu.pipeline_mode<synchronous>, transform_indices = @transform_12, window_bounds = array<i64: 8, 1>}, {transform_indices = @transform_13, window_bounds = array<i64: 8, 128>}]} {
    %c0 = arith.constant 0 : index
    %c0_0 = arith.constant 0 : index
    %0 = vector.load %arg2[%c0, %c0_0] : memref<32x1xf32, #tpu.memory_space<vmem>>, vector<32x1xf32>
    %c0_1 = arith.constant 0 : index
    %c0_2 = arith.constant 0 : index
    %1 = vector.load %arg3[%c0_1, %c0_2] : memref<32x1xf32, #tpu.memory_space<vmem>>, vector<32x1xf32>
    %c0_3 = arith.constant 0 : index
    %c0_4 = arith.constant 0 : index
    %2 = vector.load %arg4[%c0_3, %c0_4] : memref<32x32xf32, #tpu.memory_space<vmem>>, vector<32x32xf32>
    %c0_5 = arith.constant 0 : index
    %c0_6 = arith.constant 0 : index
    %3 = vector.load %arg5[%c0_5, %c0_6] : memref<32x1xf32, #tpu.memory_space<vmem>>, vector<32x1xf32>
    %c0_7 = arith.constant 0 : index
    %c0_8 = arith.constant 0 : index
    %4 = vector.load %arg6[%c0_7, %c0_8] : memref<160x32xf32, #tpu.memory_space<vmem>>, vector<160x32xf32>
    %c0_9 = arith.constant 0 : index
    %c0_10 = arith.constant 0 : index
    %5 = vector.load %arg7[%c0_9, %c0_10] : memref<160x1xf32, #tpu.memory_space<vmem>>, vector<160x1xf32>
    %c0_11 = arith.constant 0 : index
    %c0_12 = arith.constant 0 : index
    %6 = vector.load %arg8[%c0_11, %c0_12] : memref<32x160xf32, #tpu.memory_space<vmem>>, vector<32x160xf32>
    %c0_13 = arith.constant 0 : index
    %c0_14 = arith.constant 0 : index
    %7 = vector.load %arg9[%c0_13, %c0_14] : memref<32x1xf32, #tpu.memory_space<vmem>>, vector<32x1xf32>
    %c0_15 = arith.constant 0 : index
    %c0_16 = arith.constant 0 : index
    %8 = vector.load %arg10[%c0_15, %c0_16] : memref<32x32xf32, #tpu.memory_space<vmem>>, vector<32x32xf32>
    %c0_17 = arith.constant 0 : index
    %c0_18 = arith.constant 0 : index
    %9 = vector.load %arg11[%c0_17, %c0_18] : memref<32x1xf32, #tpu.memory_space<vmem>>, vector<32x1xf32>
    %c0_19 = arith.constant 0 : index
    %c0_20 = arith.constant 0 : index
    %10 = vector.load %arg12[%c0_19, %c0_20] : memref<8x32xf32, #tpu.memory_space<vmem>>, vector<8x32xf32>
    %c0_21 = arith.constant 0 : index
    %c0_22 = arith.constant 0 : index
    %11 = vector.load %arg13[%c0_21, %c0_22] : memref<8x1xf32, #tpu.memory_space<vmem>>, vector<8x1xf32>
    %c0_23 = arith.constant 0 : index
    %c0_24 = arith.constant 0 : index
    %12 = vector.load %arg1[%c0_23, %c0_24] : memref<1x128xf32, #tpu.memory_space<vmem>>, vector<1x128xf32>
    %13 = vector.broadcast %0 : vector<32x1xf32> to vector<32x128xf32>
    %14 = vector.broadcast %12 : vector<1x128xf32> to vector<32x128xf32>
    %15 = arith.mulf %13, %14 : vector<32x128xf32>
    %16 = vector.broadcast %1 : vector<32x1xf32> to vector<32x128xf32>
    %17 = arith.addf %15, %16 : vector<32x128xf32>
    %cst = arith.constant 0.000000e+00 : f32
    %18 = vector.broadcast %cst : f32 to vector<32x128xf32>
    %19 = arith.maximumf %17, %18 : vector<32x128xf32>
    %cst_25 = arith.constant dense<0.000000e+00> : vector<32x128xf32>
    %20 = tpu.matmul %2, %19, %cst_25 {dimension_numbers = #tpu.dot_dimension_numbers<[1], [0], [0], [1], [0, 0, 1, 1], [], []>} : vector<32x32xf32>, vector<32x128xf32>, vector<32x128xf32> -> vector<32x128xf32>
    %21 = vector.broadcast %3 : vector<32x1xf32> to vector<32x128xf32>
    %22 = arith.addf %20, %21 : vector<32x128xf32>
    %cst_26 = arith.constant 0.000000e+00 : f32
    %23 = vector.broadcast %cst_26 : f32 to vector<32x128xf32>
    %24 = arith.maximumf %22, %23 : vector<32x128xf32>
    %cst_27 = arith.constant dense<0.000000e+00> : vector<160x128xf32>
    %25 = tpu.matmul %4, %24, %cst_27 {dimension_numbers = #tpu.dot_dimension_numbers<[1], [0], [0], [1], [0, 0, 1, 1], [], []>} : vector<160x32xf32>, vector<32x128xf32>, vector<160x128xf32> -> vector<160x128xf32>
    %26 = vector.broadcast %5 : vector<160x1xf32> to vector<160x128xf32>
    %27 = arith.addf %25, %26 : vector<160x128xf32>
    %cst_28 = arith.constant 0.000000e+00 : f32
    %28 = vector.broadcast %cst_28 : f32 to vector<160x128xf32>
    %29 = arith.maximumf %27, %28 : vector<160x128xf32>
    %cst_29 = arith.constant dense<0.000000e+00> : vector<32x128xf32>
    %30 = tpu.matmul %6, %29, %cst_29 {dimension_numbers = #tpu.dot_dimension_numbers<[1], [0], [0], [1], [0, 0, 1, 1], [], []>} : vector<32x160xf32>, vector<160x128xf32>, vector<32x128xf32> -> vector<32x128xf32>
    %31 = vector.broadcast %7 : vector<32x1xf32> to vector<32x128xf32>
    %32 = arith.addf %30, %31 : vector<32x128xf32>
    %cst_30 = arith.constant 0.000000e+00 : f32
    %33 = vector.broadcast %cst_30 : f32 to vector<32x128xf32>
    %34 = arith.maximumf %32, %33 : vector<32x128xf32>
    %cst_31 = arith.constant dense<0.000000e+00> : vector<32x128xf32>
    %35 = tpu.matmul %8, %34, %cst_31 {dimension_numbers = #tpu.dot_dimension_numbers<[1], [0], [0], [1], [0, 0, 1, 1], [], []>} : vector<32x32xf32>, vector<32x128xf32>, vector<32x128xf32> -> vector<32x128xf32>
    %36 = vector.broadcast %9 : vector<32x1xf32> to vector<32x128xf32>
    %37 = arith.addf %35, %36 : vector<32x128xf32>
    %cst_32 = arith.constant 0.000000e+00 : f32
    %38 = vector.broadcast %cst_32 : f32 to vector<32x128xf32>
    %39 = arith.maximumf %37, %38 : vector<32x128xf32>
    %cst_33 = arith.constant dense<0.000000e+00> : vector<8x128xf32>
    %40 = tpu.matmul %10, %39, %cst_33 {dimension_numbers = #tpu.dot_dimension_numbers<[1], [0], [0], [1], [0, 0, 1, 1], [], []>} : vector<8x32xf32>, vector<32x128xf32>, vector<8x128xf32> -> vector<8x128xf32>
    %41 = vector.broadcast %11 : vector<8x1xf32> to vector<8x128xf32>
    %42 = arith.addf %40, %41 : vector<8x128xf32>
    %c0_34 = arith.constant 0 : index
    %c0_35 = arith.constant 0 : index
    %43 = vector.load %arg14[%c0_34, %c0_35] : memref<8x128xf32, #tpu.memory_space<vmem>>, vector<8x128xf32>
    tpu.vector_store %arg14[%c0_34, %c0_35], %42 {strides = array<i32>} : memref<8x128xf32, #tpu.memory_space<vmem>>, vector<8x128xf32>,
    return
  }
  func.func @transform_0(%arg0: i32) -> (i32, i32) {
    %c0_i32 = arith.constant 0 : i32
    %c0_i32_0 = arith.constant 0 : i32
    return %c0_i32, %arg0 : i32, i32
  }
  func.func @transform_1(%arg0: i32) -> (i32, i32) {
    %c0_i32 = arith.constant 0 : i32
    %c0_i32_0 = arith.constant 0 : i32
    %c0_i32_1 = arith.constant 0 : i32
    return %c0_i32, %c0_i32_0 : i32, i32
  }
  func.func @transform_2(%arg0: i32) -> (i32, i32) {
    %c0_i32 = arith.constant 0 : i32
    %c0_i32_0 = arith.constant 0 : i32
    %c0_i32_1 = arith.constant 0 : i32
    return %c0_i32, %c0_i32_0 : i32, i32
  }
  func.func @transform_3(%arg0: i32) -> (i32, i32) {
    %c0_i32 = arith.constant 0 : i32
    %c0_i32_0 = arith.constant 0 : i32
    %c0_i32_1 = arith.constant 0 : i32
    return %c0_i32, %c0_i32_0 : i32, i32
  }
  func.func @transform_4(%arg0: i32) -> (i32, i32) {
    %c0_i32 = arith.constant 0 : i32
    %c0_i32_0 = arith.constant 0 : i32
    %c0_i32_1 = arith.constant 0 : i32
    return %c0_i32, %c0_i32_0 : i32, i32
  }
  func.func @transform_5(%arg0: i32) -> (i32, i32) {
    %c0_i32 = arith.constant 0 : i32
    %c0_i32_0 = arith.constant 0 : i32
    %c0_i32_1 = arith.constant 0 : i32
    return %c0_i32, %c0_i32_0 : i32, i32
  }
  func.func @transform_6(%arg0: i32) -> (i32, i32) {
    %c0_i32 = arith.constant 0 : i32
    %c0_i32_0 = arith.constant 0 : i32
    %c0_i32_1 = arith.constant 0 : i32
    return %c0_i32, %c0_i32_0 : i32, i32
  }
  func.func @transform_7(%arg0: i32) -> (i32, i32) {
    %c0_i32 = arith.constant 0 : i32
    %c0_i32_0 = arith.constant 0 : i32
    %c0_i32_1 = arith.constant 0 : i32
    return %c0_i32, %c0_i32_0 : i32, i32
  }
  func.func @transform_8(%arg0: i32) -> (i32, i32) {
    %c0_i32 = arith.constant 0 : i32
    %c0_i32_0 = arith.constant 0 : i32
    %c0_i32_1 = arith.constant 0 : i32
    return %c0_i32, %c0_i32_0 : i32, i32
  }
  func.func @transform_9(%arg0: i32) -> (i32, i32) {
    %c0_i32 = arith.constant 0 : i32
    %c0_i32_0 = arith.constant 0 : i32
    %c0_i32_1 = arith.constant 0 : i32
    return %c0_i32, %c0_i32_0 : i32, i32
  }
  func.func @transform_10(%arg0: i32) -> (i32, i32) {
    %c0_i32 = arith.constant 0 : i32
    %c0_i32_0 = arith.constant 0 : i32
    %c0_i32_1 = arith.constant 0 : i32
    return %c0_i32, %c0_i32_0 : i32, i32
  }
  func.func @transform_11(%arg0: i32) -> (i32, i32) {
    %c0_i32 = arith.constant 0 : i32
    %c0_i32_0 = arith.constant 0 : i32
    %c0_i32_1 = arith.constant 0 : i32
    return %c0_i32, %c0_i32_0 : i32, i32
  }
  func.func @transform_12(%arg0: i32) -> (i32, i32) {
    %c0_i32 = arith.constant 0 : i32
    %c0_i32_0 = arith.constant 0 : i32
    %c0_i32_1 = arith.constant 0 : i32
    return %c0_i32, %c0_i32_0 : i32, i32
  }
  func.func @transform_13(%arg0: i32) -> (i32, i32) {
    %c0_i32 = arith.constant 0 : i32
    %c0_i32_0 = arith.constant 0 : i32
    return %c0_i32, %arg0 : i32, i32
  }
}

</mosaic_0001>

<llo_original>
// kernel: mlp_forward.1
$region0: #{mlp_forward.1}
  #allocation0 [shape = 'u32[]', space=smem, size = 0x4, offset = 0x4, fixed_abs, tag = 'smem constant byte address 0x4 - core index']
  #allocation1 [shape = 'u32[72,128]{1,0:T(1,128)}', space=vmem, size = 0x9000, scoped, tag = 'internal scratch']
  %s0 = inlined_call_operand.vmem [shape: f32[1,128], index: 0, kind: input, shape index: {}]
  %s1 = inlined_call_operand.vmem [shape: f32[32,1], index: 1, kind: input, shape index: {}]
  %s2 = inlined_call_operand.vmem [shape: f32[32,1], index: 2, kind: input, shape index: {}]
  %s3 = inlined_call_operand.vmem [shape: f32[32,32], index: 3, kind: input, shape index: {}]
  %s4 = inlined_call_operand.vmem [shape: f32[32,1], index: 4, kind: input, shape index: {}]
  %s5 = inlined_call_operand.vmem [shape: f32[160,32], index: 5, kind: input, shape index: {}]
  %s6 = inlined_call_operand.vmem [shape: f32[160,1], index: 6, kind: input, shape index: {}]
  %s7 = inlined_call_operand.vmem [shape: f32[32,160], index: 7, kind: input, shape index: {}]
  %s8 = inlined_call_operand.vmem [shape: f32[32,1], index: 8, kind: input, shape index: {}]
  %s9 = inlined_call_operand.vmem [shape: f32[32,32], index: 9, kind: input, shape index: {}]
  %s10 = inlined_call_operand.vmem [shape: f32[32,1], index: 10, kind: input, shape index: {}]
  %s11 = inlined_call_operand.vmem [shape: f32[8,32], index: 11, kind: input, shape index: {}]
  %s12 = inlined_call_operand.vmem [shape: f32[8,1], index: 12, kind: input, shape index: {}]
  %s13 = inlined_call_operand.vmem [shape: f32[8,128], index: 13, kind: output, shape index: {}]
  %s14 = sld [smem:[#allocation0]]
  $region62: #{mlp_forward.1} parent=0
    _
  %s16 = ssub.s32 1, %s14
  %s17 = scalar_select 0, %s16, %s14
  // Predicated region
  $region2: #{mlp_forward.1} parent=0 // pred_check
    _
  $region3: #{mlp_forward.1} parent=0 // pred_check_branch
    %19 = sbr.rel (0) target = $region5
  $region4: #{mlp_forward.1} parent=0 // pred_region
    _
  $region5: #{mlp_forward.1} parent=0 // pred_fallthru
    _
  // Predicated region
  $region6: #{mlp_forward.1} parent=0 // pred_check
    _
  $region7: #{mlp_forward.1} parent=0 // pred_check_branch
    %21 = sbr.rel (0) target = $region9
  $region8: #{mlp_forward.1} parent=0 // pred_region
    _
  $region9: #{mlp_forward.1} parent=0 // pred_fallthru
    _
  // Predicated region
  $region10: #{mlp_forward.1} parent=0 // pred_check
    _
  $region11: #{mlp_forward.1} parent=0 // pred_check_branch
    %23 = sbr.rel (0) target = $region13
  $region12: #{mlp_forward.1} parent=0 // pred_region
    _
  $region13: #{mlp_forward.1} parent=0 // pred_fallthru
    _
  // Predicated region
  $region14: #{mlp_forward.1} parent=0 // pred_check
    _
  $region15: #{mlp_forward.1} parent=0 // pred_check_branch
    %25 = sbr.rel (0) target = $region17
  $region16: #{mlp_forward.1} parent=0 // pred_region
    _
  $region17: #{mlp_forward.1} parent=0 // pred_fallthru
    _
  // Predicated region
  $region18: #{mlp_forward.1} parent=0 // pred_check
    _
  $region19: #{mlp_forward.1} parent=0 // pred_check_branch
    %27 = sbr.rel (0) target = $region21
  $region20: #{mlp_forward.1} parent=0 // pred_region
    _
  $region21: #{mlp_forward.1} parent=0 // pred_fallthru
    _
  // Predicated region
  $region22: #{mlp_forward.1} parent=0 // pred_check
    _
  $region23: #{mlp_forward.1} parent=0 // pred_check_branch
    %29 = sbr.rel (0) target = $region25
  $region24: #{mlp_forward.1} parent=0 // pred_region
    _
  $region25: #{mlp_forward.1} parent=0 // pred_fallthru
    _
  // Predicated region
  $region26: #{mlp_forward.1} parent=0 // pred_check
    _
  $region27: #{mlp_forward.1} parent=0 // pred_check_branch
    %31 = sbr.rel (0) target = $region29
  $region28: #{mlp_forward.1} parent=0 // pred_region
    _
  $region29: #{mlp_forward.1} parent=0 // pred_fallthru
    _
  // Predicated region
  $region30: #{mlp_forward.1} parent=0 // pred_check
    _
  $region31: #{mlp_forward.1} parent=0 // pred_check_branch
    %33 = sbr.rel (0) target = $region33
  $region32: #{mlp_forward.1} parent=0 // pred_region
    _
  $region33: #{mlp_forward.1} parent=0 // pred_fallthru
    _
  // Predicated region
  $region34: #{mlp_forward.1} parent=0 // pred_check
    _
  $region35: #{mlp_forward.1} parent=0 // pred_check_branch
    %35 = sbr.rel (0) target = $region37
  $region36: #{mlp_forward.1} parent=0 // pred_region
    _
  $region37: #{mlp_forward.1} parent=0 // pred_fallthru
    _
  // Predicated region
  $region38: #{mlp_forward.1} parent=0 // pred_check
    _
  $region39: #{mlp_forward.1} parent=0 // pred_check_branch
    %37 = sbr.rel (0) target = $region41
  $region40: #{mlp_forward.1} parent=0 // pred_region
    _
  $region41: #{mlp_forward.1} parent=0 // pred_fallthru
    _
  // Predicated region
  $region42: #{mlp_forward.1} parent=0 // pred_check
    _
  $region43: #{mlp_forward.1} parent=0 // pred_check_branch
    %39 = sbr.rel (0) target = $region45
  $region44: #{mlp_forward.1} parent=0 // pred_region
    _
  $region45: #{mlp_forward.1} parent=0 // pred_fallthru
    _
  // Predicated region
  $region46: #{mlp_forward.1} parent=0 // pred_check
    _
  $region47: #{mlp_forward.1} parent=0 // pred_check_branch
    %41 = sbr.rel (0) target = $region49
  $region48: #{mlp_forward.1} parent=0 // pred_region
    _
  $region49: #{mlp_forward.1} parent=0 // pred_fallthru
    _
  // Predicated region
  $region50: #{mlp_forward.1} parent=0 // pred_check
    _
  $region51: #{mlp_forward.1} parent=0 // pred_check_branch
    %43 = sbr.rel (0) target = $region53
  $region52: #{mlp_forward.1} parent=0 // pred_region
    _
  $region53: #{mlp_forward.1} parent=0 // pred_fallthru
    _
  %v44 = vld [vmem:[%s1] sm:$0xff]
  %v45 = vld [vmem:[%s1 + $0x8] sm:$0xff]
  %v46 = vld [vmem:[%s1 + $0x10] sm:$0xff]
  %v47 = vld [vmem:[%s1 + $0x18] sm:$0xff]
  %v48 = vld [vmem:[%s2] sm:$0xff]
  %v49 = vld [vmem:[%s2 + $0x8] sm:$0xff]
  %v50 = vld [vmem:[%s2 + $0x10] sm:$0xff]
  %v51 = vld [vmem:[%s2 + $0x18] sm:$0xff]
  %v52 = vld [vmem:[%s3] sm:$0xff]
  %v53 = vld [vmem:[%s3 + $0x8] sm:$0xff]
  %v54 = vld [vmem:[%s3 + $0x10] sm:$0xff]
  %v55 = vld [vmem:[%s3 + $0x18] sm:$0xff]
  %v56 = vld [vmem:[%s4] sm:$0xff]
  %v57 = vld [vmem:[%s4 + $0x8] sm:$0xff]
  %v58 = vld [vmem:[%s4 + $0x10] sm:$0xff]
  %v59 = vld [vmem:[%s4 + $0x18] sm:$0xff]
  %v60 = vld [vmem:[%s5] sm:$0xff]
  %v61 = vld [vmem:[%s5 + $0x8] sm:$0xff]
  %v62 = vld [vmem:[%s5 + $0x10] sm:$0xff]
  %v63 = vld [vmem:[%s5 + $0x18] sm:$0xff]
  %v64 = vld [vmem:[%s5 + $0x20] sm:$0xff]
  %v65 = vld [vmem:[%s5 + $0x28] sm:$0xff]
  %v66 = vld [vmem:[%s5 + $0x30] sm:$0xff]
  %v67 = vld [vmem:[%s5 + $0x38] sm:$0xff]
  %v68 = vld [vmem:[%s5 + $0x40] sm:$0xff]
  %v69 = vld [vmem:[%s5 + $0x48] sm:$0xff]
  %v70 = vld [vmem:[%s5 + $0x50] sm:$0xff]
  %v71 = vld [vmem:[%s5 + $0x58] sm:$0xff]
  %v72 = vld [vmem:[%s5 + $0x60] sm:$0xff]
  %v73 = vld [vmem:[%s5 + $0x68] sm:$0xff]
  %v74 = vld [vmem:[%s5 + $0x70] sm:$0xff]
  %v75 = vld [vmem:[%s5 + $0x78] sm:$0xff]
  %v76 = vld [vmem:[%s5 + $0x80] sm:$0xff]
  %v77 = vld [vmem:[%s5 + $0x88] sm:$0xff]
  %v78 = vld [vmem:[%s5 + $0x90] sm:$0xff]
  %v79 = vld [vmem:[%s5 + $0x98] sm:$0xff]
  %v80 = vld [vmem:[%s6] sm:$0xff]
  %v81 = vld [vmem:[%s6 + $0x8] sm:$0xff]
  %v82 = vld [vmem:[%s6 + $0x10] sm:$0xff]
  %v83 = vld [vmem:[%s6 + $0x18] sm:$0xff]
  %v84 = vld [vmem:[%s6 + $0x20] sm:$0xff]
  %v85 = vld [vmem:[%s6 + $0x28] sm:$0xff]
  %v86 = vld [vmem:[%s6 + $0x30] sm:$0xff]
  %v87 = vld [vmem:[%s6 + $0x38] sm:$0xff]
  %v88 = vld [vmem:[%s6 + $0x40] sm:$0xff]
  %v89 = vld [vmem:[%s6 + $0x48] sm:$0xff]
  %v90 = vld [vmem:[%s6 + $0x50] sm:$0xff]
  %v91 = vld [vmem:[%s6 + $0x58] sm:$0xff]
  %v92 = vld [vmem:[%s6 + $0x60] sm:$0xff]
  %v93 = vld [vmem:[%s6 + $0x68] sm:$0xff]
  %v94 = vld [vmem:[%s6 + $0x70] sm:$0xff]
  %v95 = vld [vmem:[%s6 + $0x78] sm:$0xff]
  %v96 = vld [vmem:[%s6 + $0x80] sm:$0xff]
  %v97 = vld [vmem:[%s6 + $0x88] sm:$0xff]
  %v98 = vld [vmem:[%s6 + $0x90] sm:$0xff]
  %v99 = vld [vmem:[%s6 + $0x98] sm:$0xff]
  %v100 = vld [vmem:[%s7] sm:$0xff]
  %v101 = vld [vmem:[%s7 + $0x8] sm:$0xff]
  %v102 = vld [vmem:[%s7 + $0x10] sm:$0xff]
  %v103 = vld [vmem:[%s7 + $0x18] sm:$0xff]
  %v104 = vld [vmem:[%s7 + $0x20] sm:$0xff]
  %v105 = vld [vmem:[%s7 + $0x28] sm:$0xff]
  %v106 = vld [vmem:[%s7 + $0x30] sm:$0xff]
  %v107 = vld [vmem:[%s7 + $0x38] sm:$0xff]
  %v108 = vld [vmem:[%s8] sm:$0xff]
  %v109 = vld [vmem:[%s8 + $0x8] sm:$0xff]
  %v110 = vld [vmem:[%s8 + $0x10] sm:$0xff]
  %v111 = vld [vmem:[%s8 + $0x18] sm:$0xff]
  %v112 = vld [vmem:[%s9] sm:$0xff]
  %v113 = vld [vmem:[%s9 + $0x8] sm:$0xff]
  %v114 = vld [vmem:[%s9 + $0x10] sm:$0xff]
  %v115 = vld [vmem:[%s9 + $0x18] sm:$0xff]
  %v116 = vld [vmem:[%s10] sm:$0xff]
  %v117 = vld [vmem:[%s10 + $0x8] sm:$0xff]
  %v118 = vld [vmem:[%s10 + $0x10] sm:$0xff]
  %v119 = vld [vmem:[%s10 + $0x18] sm:$0xff]
  %v120 = vld [vmem:[%s11] sm:$0xff]
  %v121 = vld [vmem:[%s12] sm:$0xff]
  %v122 = vld [vmem:[%s0] sm:$0x1]
  %124 = vset.pattern.permute.xlu0 0
  %125 = vperm.xlu0 %124, %v44
  %v126 = vpop.permute.xlu0 %125
  %129 = vset.pattern.permute.xlu0 0
  %130 = vperm.xlu0 %129, %v45
  %v131 = vpop.permute.xlu0 %130
  %134 = vset.pattern.permute.xlu0 0
  %135 = vperm.xlu0 %134, %v46
  %v136 = vpop.permute.xlu0 %135
  %139 = vset.pattern.permute.xlu0 0
  %140 = vperm.xlu0 %139, %v47
  %v141 = vpop.permute.xlu0 %140
  %v144 = vperm.slane %v122, 0
  %v146 = vmul.f32 %v126, %v144
  %v147 = vmul.f32 %v131, %v144
  %v148 = vmul.f32 %v136, %v144
  %v149 = vmul.f32 %v141, %v144
  %151 = vset.pattern.permute.xlu0 0
  %152 = vperm.xlu0 %151, %v48
  %v153 = vpop.permute.xlu0 %152
  %156 = vset.pattern.permute.xlu0 0
  %157 = vperm.xlu0 %156, %v49
  %v158 = vpop.permute.xlu0 %157
  %161 = vset.pattern.permute.xlu0 0
  %162 = vperm.xlu0 %161, %v50
  %v163 = vpop.permute.xlu0 %162
  %166 = vset.pattern.permute.xlu0 0
  %167 = vperm.xlu0 %166, %v51
  %v168 = vpop.permute.xlu0 %167
  %v170 = vadd.f32 %v146, %v153
  %v171 = vadd.f32 %v147, %v158
  %v172 = vadd.f32 %v148, %v163
  %v173 = vadd.f32 %v149, %v168
  %v174 = vmax.f32 %v170, 0.0
  %v175 = vmax.f32 %v171, 0.0
  %v176 = vmax.f32 %v172, 0.0
  %v177 = vmax.f32 %v173, 0.0
  %179 = vset.pattern.permute.xlu0 0
  %180 = vperm.xlu0 %179, %v56
  %v181 = vpop.permute.xlu0 %180
  %184 = vset.pattern.permute.xlu0 0
  %185 = vperm.xlu0 %184, %v57
  %v186 = vpop.permute.xlu0 %185
  %189 = vset.pattern.permute.xlu0 0
  %190 = vperm.xlu0 %189, %v58
  %v191 = vpop.permute.xlu0 %190
  %194 = vset.pattern.permute.xlu0 0
  %195 = vperm.xlu0 %194, %v59
  %v196 = vpop.permute.xlu0 %195
  %vm198 = vcmask 261120
  %v200 = vsel %vm198, %v52, 0
  %v203 = vsel %vm198, %v53, 0
  %v206 = vsel %vm198, %v54, 0
  %v209 = vsel %vm198, %v55, 0
  %211 = vmatpush.msra.mxu0 0.0
  %212 = vmatpush.msra.mxu0 0.0
  %213 = vmatpush.msra.mxu0 0.0
  %214 = vmatpush.msra.mxu0 0.0
  %215 = vmatpush.msra.mxu0 0.0
  %216 = vmatpush.msra.mxu0 0.0
  %217 = vmatpush.msra.mxu0 0.0
  %218 = vmatpush.msra.mxu0 0.0
  %219 = vmatpush.msra.mxu0 0.0
  %220 = vmatpush.msra.mxu0 0.0
  %221 = vmatpush.msra.mxu0 0.0
  %222 = vmatpush.msra.mxu0 0.0
  %223 = vmatpush.msra.mxu0 %v177
  %224 = vmatpush.msra.mxu0 %v176
  %225 = vmatpush.msra.mxu0 %v175
  %226 = vmatpush.msra.mxu0 %v174
  %227 = vmatmul.f32.gmra.mxu0 %v200
  %v228 = vpop.f32.mrf.mxu0
  %v229 = vadd.f32 %v181, %v228
  %230 = vmatmul.f32.gmra.mxu0 %v203
  %v231 = vpop.f32.mrf.mxu0
  %v232 = vadd.f32 %v186, %v231
  %233 = vmatmul.f32.gmra.mxu0 %v206
  %v234 = vpop.f32.mrf.mxu0
  %v235 = vadd.f32 %v191, %v234
  %236 = vmatmul.f32.gmra.mxu0 %v209
  %v237 = vpop.f32.mrf.mxu0
  %v238 = vadd.f32 %v196, %v237
  %239 = vdwg.mxu0
  %v240 = vmax.f32 %v229, 0.0
  %v241 = vmax.f32 %v232, 0.0
  %v242 = vmax.f32 %v235, 0.0
  %v243 = vmax.f32 %v238, 0.0
  %245 = vset.pattern.permute.xlu0 0
  %246 = vperm.xlu0 %245, %v80
  %v247 = vpop.permute.xlu0 %246
  %250 = vset.pattern.permute.xlu0 0
  %251 = vperm.xlu0 %250, %v81
  %v252 = vpop.permute.xlu0 %251
  %255 = vset.pattern.permute.xlu0 0
  %256 = vperm.xlu0 %255, %v82
  %v257 = vpop.permute.xlu0 %256
  %260 = vset.pattern.permute.xlu0 0
  %261 = vperm.xlu0 %260, %v83
  %v262 = vpop.permute.xlu0 %261
  %265 = vset.pattern.permute.xlu0 0
  %266 = vperm.xlu0 %265, %v84
  %v267 = vpop.permute.xlu0 %266
  %270 = vset.pattern.permute.xlu0 0
  %271 = vperm.xlu0 %270, %v85
  %v272 = vpop.permute.xlu0 %271
  %275 = vset.pattern.permute.xlu0 0
  %276 = vperm.xlu0 %275, %v86
  %v277 = vpop.permute.xlu0 %276
  %280 = vset.pattern.permute.xlu0 0
  %281 = vperm.xlu0 %280, %v87
  %v282 = vpop.permute.xlu0 %281
  %285 = vset.pattern.permute.xlu0 0
  %286 = vperm.xlu0 %285, %v88
  %v287 = vpop.permute.xlu0 %286
  %290 = vset.pattern.permute.xlu0 0
  %291 = vperm.xlu0 %290, %v89
  %v292 = vpop.permute.xlu0 %291
  %295 = vset.pattern.permute.xlu0 0
  %296 = vperm.xlu0 %295, %v90
  %v297 = vpop.permute.xlu0 %296
  %300 = vset.pattern.permute.xlu0 0
  %301 = vperm.xlu0 %300, %v91
  %v302 = vpop.permute.xlu0 %301
  %305 = vset.pattern.permute.xlu0 0
  %306 = vperm.xlu0 %305, %v92
  %v307 = vpop.permute.xlu0 %306
  %310 = vset.pattern.permute.xlu0 0
  %311 = vperm.xlu0 %310, %v93
  %v312 = vpop.permute.xlu0 %311
  %315 = vset.pattern.permute.xlu0 0
  %316 = vperm.xlu0 %315, %v94
  %v317 = vpop.permute.xlu0 %316
  %320 = vset.pattern.permute.xlu0 0
  %321 = vperm.xlu0 %320, %v95
  %v322 = vpop.permute.xlu0 %321
  %325 = vset.pattern.permute.xlu0 0
  %326 = vperm.xlu0 %325, %v96
  %v327 = vpop.permute.xlu0 %326
  %330 = vset.pattern.permute.xlu0 0
  %331 = vperm.xlu0 %330, %v97
  %v332 = vpop.permute.xlu0 %331
  %335 = vset.pattern.permute.xlu0 0
  %336 = vperm.xlu0 %335, %v98
  %v337 = vpop.permute.xlu0 %336
  %340 = vset.pattern.permute.xlu0 0
  %341 = vperm.xlu0 %340, %v99
  %v342 = vpop.permute.xlu0 %341
  %v345 = vsel %vm198, %v60, 0
  %v348 = vsel %vm198, %v61, 0
  %v351 = vsel %vm198, %v62, 0
  %v354 = vsel %vm198, %v63, 0
  %v357 = vsel %vm198, %v64, 0
  %v360 = vsel %vm198, %v65, 0
  %v363 = vsel %vm198, %v66, 0
  %v366 = vsel %vm198, %v67, 0
  %v369 = vsel %vm198, %v68, 0
  %v372 = vsel %vm198, %v69, 0
  %v375 = vsel %vm198, %v70, 0
  %v378 = vsel %vm198, %v71, 0
  %v381 = vsel %vm198, %v72, 0
  %v384 = vsel %vm198, %v73, 0
  %v387 = vsel %vm198, %v74, 0
  %v390 = vsel %vm198, %v75, 0
  %v393 = vsel %vm198, %v76, 0
  %v396 = vsel %vm198, %v77, 0
  %v399 = vsel %vm198, %v78, 0
  %v402 = vsel %vm198, %v79, 0
  %404 = vmatpush.msra.mxu0 0.0
  %405 = vmatpush.msra.mxu0 0.0
  %406 = vmatpush.msra.mxu0 0.0
  %407 = vmatpush.msra.mxu0 0.0
  %408 = vmatpush.msra.mxu0 0.0
  %409 = vmatpush.msra.mxu0 0.0
  %410 = vmatpush.msra.mxu0 0.0
  %411 = vmatpush.msra.mxu0 0.0
  %412 = vmatpush.msra.mxu0 0.0
  %413 = vmatpush.msra.mxu0 0.0
  %414 = vmatpush.msra.mxu0 0.0
  %415 = vmatpush.msra.mxu0 0.0
  %416 = vmatpush.msra.mxu0 %v243
  %417 = vmatpush.msra.mxu0 %v242
  %418 = vmatpush.msra.mxu0 %v241
  %419 = vmatpush.msra.mxu0 %v240
  %420 = vmatmul.f32.gmra.mxu0 %v345
  %v421 = vpop.f32.mrf.mxu0
  %v422 = vadd.f32 %v247, %v421
  %423 = vmatmul.f32.gmra.mxu0 %v348
  %v424 = vpop.f32.mrf.mxu0
  %v425 = vadd.f32 %v252, %v424
  %426 = vmatmul.f32.gmra.mxu0 %v351
  %v427 = vpop.f32.mrf.mxu0
  %v428 = vadd.f32 %v257, %v427
  %429 = vmatmul.f32.gmra.mxu0 %v354
  %v430 = vpop.f32.mrf.mxu0
  %v431 = vadd.f32 %v262, %v430
  %432 = vmatmul.f32.gmra.mxu0 %v357
  %v433 = vpop.f32.mrf.mxu0
  %v434 = vadd.f32 %v267, %v433
  %435 = vmatmul.f32.gmra.mxu0 %v360
  %v436 = vpop.f32.mrf.mxu0
  %v437 = vadd.f32 %v272, %v436
  %438 = vmatmul.f32.gmra.mxu0 %v363
  %v439 = vpop.f32.mrf.mxu0
  %v440 = vadd.f32 %v277, %v439
  %441 = vmatmul.f32.gmra.mxu0 %v366
  %v442 = vpop.f32.mrf.mxu0
  %v443 = vadd.f32 %v282, %v442
  %444 = vmatmul.f32.gmra.mxu0 %v369
  %v445 = vpop.f32.mrf.mxu0
  %v446 = vadd.f32 %v287, %v445
  %447 = vmatmul.f32.gmra.mxu0 %v372
  %v448 = vpop.f32.mrf.mxu0
  %v449 = vadd.f32 %v292, %v448
  %450 = vmatmul.f32.gmra.mxu0 %v375
  %v451 = vpop.f32.mrf.mxu0
  %v452 = vadd.f32 %v297, %v451
  %453 = vmatmul.f32.gmra.mxu0 %v378
  %v454 = vpop.f32.mrf.mxu0
  %v455 = vadd.f32 %v302, %v454
  %456 = vmatmul.f32.gmra.mxu0 %v381
  %v457 = vpop.f32.mrf.mxu0
  %v458 = vadd.f32 %v307, %v457
  %459 = vmatmul.f32.gmra.mxu0 %v384
  %v460 = vpop.f32.mrf.mxu0
  %v461 = vadd.f32 %v312, %v460
  %462 = vmatmul.f32.gmra.mxu0 %v387
  %v463 = vpop.f32.mrf.mxu0
  %v464 = vadd.f32 %v317, %v463
  %465 = vmatmul.f32.gmra.mxu0 %v390
  %v466 = vpop.f32.mrf.mxu0
  %v467 = vadd.f32 %v322, %v466
  %468 = vmatmul.f32.gmra.mxu0 %v393
  %v469 = vpop.f32.mrf.mxu0
  %v470 = vadd.f32 %v327, %v469
  %471 = vmatmul.f32.gmra.mxu0 %v396
  %v472 = vpop.f32.mrf.mxu0
  %v473 = vadd.f32 %v332, %v472
  %474 = vmatmul.f32.gmra.mxu0 %v399
  %v475 = vpop.f32.mrf.mxu0
  %v476 = vadd.f32 %v337, %v475
  %477 = vmatmul.f32.gmra.mxu0 %v402
  %v478 = vpop.f32.mrf.mxu0
  %v479 = vadd.f32 %v342, %v478
  %480 = vdwg.mxu0
  %v481 = vmax.f32 %v422, 0.0
  %v482 = vmax.f32 %v425, 0.0
  %v483 = vmax.f32 %v428, 0.0
  %v484 = vmax.f32 %v431, 0.0
  %v485 = vmax.f32 %v434, 0.0
  %v486 = vmax.f32 %v437, 0.0
  %v487 = vmax.f32 %v440, 0.0
  %v488 = vmax.f32 %v443, 0.0
  %v489 = vmax.f32 %v446, 0.0
  %v490 = vmax.f32 %v449, 0.0
  %v491 = vmax.f32 %v452, 0.0
  %v492 = vmax.f32 %v455, 0.0
  %v493 = vmax.f32 %v458, 0.0
  %v494 = vmax.f32 %v461, 0.0
  %v495 = vmax.f32 %v464, 0.0
  %v496 = vmax.f32 %v467, 0.0
  %v497 = vmax.f32 %v470, 0.0
  %v498 = vmax.f32 %v473, 0.0
  %v499 = vmax.f32 %v476, 0.0
  %v500 = vmax.f32 %v479, 0.0
  %502 = vset.pattern.permute.xlu0 0
  %503 = vperm.xlu0 %502, %v108
  %v504 = vpop.permute.xlu0 %503
  %507 = vset.pattern.permute.xlu0 0
  %508 = vperm.xlu0 %507, %v109
  %v509 = vpop.permute.xlu0 %508
  %512 = vset.pattern.permute.xlu0 0
  %513 = vperm.xlu0 %512, %v110
  %v514 = vpop.permute.xlu0 %513
  %517 = vset.pattern.permute.xlu0 0
  %518 = vperm.xlu0 %517, %v111
  %v519 = vpop.permute.xlu0 %518
  %v522 = vsel %vm198, %v101, 0
  %v525 = vsel %vm198, %v103, 0
  %v528 = vsel %vm198, %v105, 0
  %v531 = vsel %vm198, %v107, 0
  %533 = vmatpush.msra.mxu0 %v496
  %534 = vmatpush.msra.mxu0 %v495
  %535 = vmatpush.msra.mxu0 %v494
  %536 = vmatpush.msra.mxu0 %v493
  %537 = vmatpush.msra.mxu0 %v492
  %538 = vmatpush.msra.mxu0 %v491
  %539 = vmatpush.msra.mxu0 %v490
  %540 = vmatpush.msra.mxu0 %v489
  %541 = vmatpush.msra.mxu0 %v488
  %542 = vmatpush.msra.mxu0 %v487
  %543 = vmatpush.msra.mxu0 %v486
  %544 = vmatpush.msra.mxu0 %v485
  %545 = vmatpush.msra.mxu0 %v484
  %546 = vmatpush.msra.mxu0 %v483
  %547 = vmatpush.msra.mxu0 %v482
  %548 = vmatpush.msra.mxu0 %v481
  %549 = vmatmul.f32.gmra.mxu0 %v100
  %v550 = vpop.f32.mrf.mxu0
  %v551 = vadd.f32 %v504, %v550
  %552 = vmatmul.f32.gmra.mxu0 %v102
  %v553 = vpop.f32.mrf.mxu0
  %v554 = vadd.f32 %v509, %v553
  %555 = vmatmul.f32.gmra.mxu0 %v104
  %v556 = vpop.f32.mrf.mxu0
  %v557 = vadd.f32 %v514, %v556
  %558 = vmatmul.f32.gmra.mxu0 %v106
  %v559 = vpop.f32.mrf.mxu0
  %v560 = vadd.f32 %v519, %v559
  %561 = vdwg.mxu0
  %562 = vmatpush.msra.mxu0 0.0
  %563 = vmatpush.msra.mxu0 0.0
  %564 = vmatpush.msra.mxu0 0.0
  %565 = vmatpush.msra.mxu0 0.0
  %566 = vmatpush.msra.mxu0 0.0
  %567 = vmatpush.msra.mxu0 0.0
  %568 = vmatpush.msra.mxu0 0.0
  %569 = vmatpush.msra.mxu0 0.0
  %570 = vmatpush.msra.mxu0 0.0
  %571 = vmatpush.msra.mxu0 0.0
  %572 = vmatpush.msra.mxu0 0.0
  %573 = vmatpush.msra.mxu0 0.0
  %574 = vmatpush.msra.mxu0 %v500
  %575 = vmatpush.msra.mxu0 %v499
  %576 = vmatpush.msra.mxu0 %v498
  %577 = vmatpush.msra.mxu0 %v497
  %578 = vmatmul.f32.gmra.mxu0 %v522
  %v579 = vpop.f32.mrf.mxu0
  %v580 = vadd.f32 %v551, %v579
  %581 = vmatmul.f32.gmra.mxu0 %v525
  %v582 = vpop.f32.mrf.mxu0
  %v583 = vadd.f32 %v554, %v582
  %584 = vmatmul.f32.gmra.mxu0 %v528
  %v585 = vpop.f32.mrf.mxu0
  %v586 = vadd.f32 %v557, %v585
  %587 = vmatmul.f32.gmra.mxu0 %v531
  %v588 = vpop.f32.mrf.mxu0
  %v589 = vadd.f32 %v560, %v588
  %590 = vdwg.mxu0
  %v591 = vmax.f32 %v580, 0.0
  %v592 = vmax.f32 %v583, 0.0
  %v593 = vmax.f32 %v586, 0.0
  %v594 = vmax.f32 %v589, 0.0
  %596 = vset.pattern.permute.xlu0 0
  %597 = vperm.xlu0 %596, %v116
  %v598 = vpop.permute.xlu0 %597
  %601 = vset.pattern.permute.xlu0 0
  %602 = vperm.xlu0 %601, %v117
  %v603 = vpop.permute.xlu0 %602
  %606 = vset.pattern.permute.xlu0 0
  %607 = vperm.xlu0 %606, %v118
  %v608 = vpop.permute.xlu0 %607
  %611 = vset.pattern.permute.xlu0 0
  %612 = vperm.xlu0 %611, %v119
  %v613 = vpop.permute.xlu0 %612
  %v616 = vsel %vm198, %v112, 0
  %v619 = vsel %vm198, %v113, 0
  %v622 = vsel %vm198, %v114, 0
  %v625 = vsel %vm198, %v115, 0
  %627 = vmatpush.msra.mxu0 0.0
  %628 = vmatpush.msra.mxu0 0.0
  %629 = vmatpush.msra.mxu0 0.0
  %630 = vmatpush.msra.mxu0 0.0
  %631 = vmatpush.msra.mxu0 0.0
  %632 = vmatpush.msra.mxu0 0.0
  %633 = vmatpush.msra.mxu0 0.0
  %634 = vmatpush.msra.mxu0 0.0
  %635 = vmatpush.msra.mxu0 0.0
  %636 = vmatpush.msra.mxu0 0.0
  %637 = vmatpush.msra.mxu0 0.0
  %638 = vmatpush.msra.mxu0 0.0
  %639 = vmatpush.msra.mxu0 %v594
  %640 = vmatpush.msra.mxu0 %v593
  %641 = vmatpush.msra.mxu0 %v592
  %642 = vmatpush.msra.mxu0 %v591
  %643 = vmatmul.f32.gmra.mxu0 %v616
  %v644 = vpop.f32.mrf.mxu0
  %v645 = vadd.f32 %v598, %v644
  %646 = vmatmul.f32.gmra.mxu0 %v619
  %v647 = vpop.f32.mrf.mxu0
  %v648 = vadd.f32 %v603, %v647
  %649 = vmatmul.f32.gmra.mxu0 %v622
  %v650 = vpop.f32.mrf.mxu0
  %v651 = vadd.f32 %v608, %v650
  %652 = vmatmul.f32.gmra.mxu0 %v625
  %v653 = vpop.f32.mrf.mxu0
  %v654 = vadd.f32 %v613, %v653
  %655 = vdwg.mxu0
  %v656 = vmax.f32 %v645, 0.0
  %v657 = vmax.f32 %v648, 0.0
  %v658 = vmax.f32 %v651, 0.0
  %v659 = vmax.f32 %v654, 0.0
  %661 = vset.pattern.permute.xlu0 0
  %662 = vperm.xlu0 %661, %v121
  %v663 = vpop.permute.xlu0 %662
  %v666 = vsel %vm198, %v120, 0
  %668 = vmatpush.msra.mxu0 0.0
  %669 = vmatpush.msra.mxu0 0.0
  %670 = vmatpush.msra.mxu0 0.0
  %671 = vmatpush.msra.mxu0 0.0
  %672 = vmatpush.msra.mxu0 0.0
  %673 = vmatpush.msra.mxu0 0.0
  %674 = vmatpush.msra.mxu0 0.0
  %675 = vmatpush.msra.mxu0 0.0
  %676 = vmatpush.msra.mxu0 0.0
  %677 = vmatpush.msra.mxu0 0.0
  %678 = vmatpush.msra.mxu0 0.0
  %679 = vmatpush.msra.mxu0 0.0
  %680 = vmatpush.msra.mxu0 %v659
  %681 = vmatpush.msra.mxu0 %v658
  %682 = vmatpush.msra.mxu0 %v657
  %683 = vmatpush.msra.mxu0 %v656
  %684 = vmatmul.f32.gmra.mxu0 %v666
  %v685 = vpop.f32.mrf.mxu0
  %v686 = vadd.f32 %v663, %v685
  %687 = vdwg.mxu0
  %688 = vst [vmem:[%s13] sm:$0xff] %v686
  // Predicated region
  $region54: #{mlp_forward.1} parent=0 // pred_check
    _
  $region55: #{mlp_forward.1} parent=0 // pred_check_branch
    %690 = sbr.rel (0) target = $region57
  $region56: #{mlp_forward.1} parent=0 // pred_region
    _
  $region57: #{mlp_forward.1} parent=0 // pred_fallthru
    _
  // Predicated region
  $region58: #{mlp_forward.1} parent=0 // pred_check
    _
  $region59: #{mlp_forward.1} parent=0 // pred_check_branch
    %692 = sbr.rel (0) target = $region61
  $region60: #{mlp_forward.1} parent=0 // pred_region
    _
  $region61: #{mlp_forward.1} parent=0 // pred_fallthru
    _

</llo_original>
